<compile_context>
chip_gen: v7x
topology: tpu7x:2x2x1
jax: 0.10.0
libtpu: 0.0.40
codegen_flags: <defaults>
</compile_context>

<pallas_src>
import math

import jax
import jax.numpy as jnp
from jax.experimental import pallas as pl
from jax.experimental.pallas import tpu as pltpu

LANE = 128
SUBLANE = 8


def actor_kernel(x_ref, w1_ref, b1_ref, w2_ref, b2_ref, w3_ref, b3_ref, o_ref):
    # Cast the f32 state tile to the matmul-operand dtype in-kernel (no extra
    # host-side cast pass; no-op in the pure f32 path).
    x = x_ref[...].astype(w1_ref.dtype)
    # layer 1: Linear + ReLU   (MXU matmul, f32 accumulate, f32 epilogue)
    h1 = jnp.dot(x, w1_ref[...], preferred_element_type=jnp.float32)
    h1 = jnp.maximum(h1 + b1_ref[...], 0.0)
    # layer 2: Linear + ReLU
    h2 = jnp.dot(h1.astype(w2_ref.dtype), w2_ref[...],
                 preferred_element_type=jnp.float32)
    h2 = jnp.maximum(h2 + b2_ref[...], 0.0)
    # layer 3: Linear + tanh.  The matmul runs at the lane-padded width, but
    # only the A useful action lanes are stored (o_ref is (tile_b, A)).
    h3 = jnp.dot(h2.astype(w3_ref.dtype), w3_ref[...],
                 preferred_element_type=jnp.float32)
    a = o_ref.shape[-1]
    o_ref[...] = jnp.tanh(h3[:, :a] + b3_ref[...]).astype(o_ref.dtype)


def _round_up(x, m):
    return (x + m - 1) // m * m


def _pad2(a, rows, cols):
    r, c = a.shape
    return jnp.pad(a, ((0, rows - r), (0, cols - c)))


def prepare_actor_params(params, *, compute_dtype=jnp.bfloat16):
    """One-time (hoisted) preparation of the Actor params for the kernel.

    * Hidden widths (and w3's contraction dim) are zero-padded to 128 lanes so
      MXU columns are full; the padding is mathematically inert
      (relu(0)=0, zero rows/cols of W contribute nothing).
    * Weights are cast to `compute_dtype` (default bf16 - native MXU format);
      biases stay f32 because the bias/relu/tanh epilogue runs in f32.
    * w3/b3 keep their true output width A so the kernel only produces/stores
      the useful action lanes.
    """
    S, H1 = params["w1"].shape
    H2 = params["w2"].shape[1]
    A = params["w3"].shape[1]
    H1p, H2p, Ap = (_round_up(d, LANE) for d in (H1, H2, A))

    w1 = _pad2(params["w1"], S, H1p).astype(compute_dtype)
    w2 = _pad2(params["w2"], H1p, H2p).astype(compute_dtype)
    w3 = _pad2(params["w3"], H2p, Ap).astype(compute_dtype)
    b1 = _pad2(params["b1"], 1, H1p)          # f32
    b2 = _pad2(params["b2"], 1, H2p)          # f32
    b3 = params["b3"]                         # f32, unpadded (1, A)
    return {"w1": w1, "b1": b1, "w2": w2, "b2": b2, "w3": w3, "b3": b3}


def _vmem_budget_bytes():
    """Generation-aware scoped-VMEM limit (64 MiB on 128-MiB parts, 32 MiB on v7x)."""
    try:
        cap = int(pltpu.get_tpu_info().vmem_capacity_bytes)
    except Exception:
        cap = 64 << 20  # conservative fallback (v7x per-TC physical VMEM)
    return min(cap // 2, 64 << 20)


def actor_forward(state, prepared, *, tile_b=4096):
    """state: [B, S] float32; prepared: output of prepare_actor_params().

    tile_b: requested batch tile (rounded to a multiple of 8, clamped to the
            batch extent and to the per-chip VMEM budget).  Large tiles
            amortize per-grid-step overhead; at these widths a 4096-row tile
            uses ~7 MiB of VMEM, well under every generation's budget.
    """
    B, S = state.shape
    H1p = prepared["w1"].shape[1]
    H2p = prepared["w2"].shape[1]
    Ap = prepared["w3"].shape[1]
    A = prepared["b3"].shape[1]
    op_bytes = jnp.dtype(prepared["w1"].dtype).itemsize

    vmem_limit = _vmem_budget_bytes()

    def tile_vmem_bytes(tb):
        io = 2 * tb * S * 4 + 2 * tb * A * 4                        # dbuf in/out
        wts = 2 * (S * H1p + H1p * H2p + H2p * Ap) * op_bytes       # dbuf weights
        wts += 2 * (H1p + H2p + A) * 4                              # dbuf biases
        inter = (tb * (H1p + H2p) * (4 + op_bytes)                  # h1/h2 + casts
                 + tb * (S + Ap + A) * op_bytes + tb * Ap * 4)      # x cast, h3
        return io + wts + inter

    # Sublane-aligned tile, clamped to the batch extent and the VMEM budget.
    tile_b = _round_up(max(SUBLANE, min(int(tile_b), _round_up(B, SUBLANE))),
                       SUBLANE)
    while tile_b > SUBLANE and tile_vmem_bytes(tile_b) > (vmem_limit * 7) // 10:
        tile_b = _round_up(tile_b // 2, SUBLANE)

    grid = (pl.cdiv(B, tile_b),)  # ragged last tile: OOB rows are never written

    const = lambda shape: pl.BlockSpec(shape, lambda i: (0, 0))

    cost = pl.CostEstimate(
        flops=2 * B * (S * H1p + H1p * H2p + H2p * Ap),
        transcendentals=B * A,
        bytes_accessed=(B * S * 4 + B * A * 4
                        + (S * H1p + H1p * H2p + H2p * Ap) * op_bytes
                        + (H1p + H2p + A) * 4),
    )

    out = pl.pallas_call(
        actor_kernel,
        out_shape=jax.ShapeDtypeStruct((B, A), jnp.float32),
        grid=grid,
        in_specs=[
            pl.BlockSpec((tile_b, S), lambda i: (i, 0)),   # streamed state tiles
            const((S, H1p)), const((1, H1p)),              # weights/biases: fetched
            const((H1p, H2p)), const((1, H2p)),            # once, VMEM-resident
            const((H2p, Ap)), const((1, A)),
        ],
        out_specs=pl.BlockSpec((tile_b, A), lambda i: (i, 0)),  # only A useful lanes
        compiler_params=pltpu.CompilerParams(
            dimension_semantics=("parallel",),
            vmem_limit_bytes=vmem_limit,
        ),
        cost_estimate=cost,
    )(state, prepared["w1"], prepared["b1"], prepared["w2"], prepared["b2"],
      prepared["w3"], prepared["b3"])

    return out


def init_actor_params(key, state_size, action_size, fc_1=64, fc_2=64, leak=0.01):
    """Deterministic init mirroring Actor.reset_parameters().

    kaiming_normal_(a=leak, mode='fan_in') for layers 1/2 weights,
    uniform(-0.003, 0.003) for layer 3 weight.  reset_parameters() does not
    touch biases, so all biases keep PyTorch's Linear default
    uniform(-1/sqrt(fan_in), 1/sqrt(fan_in)).
    Weights stored transposed as [in, out]; biases as [1, out].
    """
    ks = jax.random.split(key, 6)

    def kaiming_t(k, fan_in, fan_out):
        gain = math.sqrt(2.0 / (1.0 + leak ** 2))
        std = gain / math.sqrt(fan_in)
        return (jax.random.normal(k, (fan_out, fan_in), jnp.float32) * std).T

    def bias_default(k, fan_in, fan_out):
        bound = 1.0 / math.sqrt(fan_in)
        return jax.random.uniform(k, (1, fan_out), jnp.float32, -bound, bound)

    w1 = kaiming_t(ks[0], state_size, fc_1)
    b1 = bias_default(ks[1], state_size, fc_1)
    w2 = kaiming_t(ks[2], fc_1, fc_2)
    b2 = bias_default(ks[3], fc_1, fc_2)
    w3 = jax.random.uniform(ks[4], (fc_2, action_size), jnp.float32, -3e-3, 3e-3)
    b3 = bias_default(ks[5], fc_2, action_size)
    return {"w1": w1, "b1": b1, "w2": w2, "b2": b2, "w3": w3, "b3": b3}


def actor_forward_ref(state, p):
    h1 = jnp.maximum(state @ p["w1"] + p["b1"], 0.0)
    h2 = jnp.maximum(h1 @ p["w2"] + p["b2"], 0.0)
    return jnp.tanh(h2 @ p["w3"] + p["b3"])


if __name__ == "__main__":
    key = jax.random.PRNGKey(0)
    k_state, k_big, k_params = jax.random.split(key, 3)

    batch, state_size, action_size = 2, 8, 4
    state = jax.random.normal(k_state, (batch, state_size), jnp.float32)
    params = init_actor_params(k_params, state_size, action_size,
                               fc_1=64, fc_2=64, leak=0.01)
    ref = actor_forward_ref(state, params)

    # f32-operand path (exact vs reference).
    prep_f32 = prepare_actor_params(params, compute_dtype=jnp.float32)
    out = actor_forward(state, prep_f32)
    jax.block_until_ready(out)
    assert out.shape == (batch, action_size)
    assert jnp.allclose(out, ref, atol=1e-5, rtol=1e-5)

    # Default bf16 matmul-operand path (f32 accumulate; state quantized to bf16
    # at the layer-1 operand, hence the looser tolerance).
    prep_bf16 = prepare_actor_params(params)
    out_bf16 = actor_forward(state, prep_bf16)
    jax.block_until_ready(out_bf16)
    assert jnp.allclose(out_bf16, ref, atol=5e-2, rtol=5e-2)

    # Multi-tile grid + ragged batch (no full-tile input padding).
    big_state = jax.random.normal(k_big, (50, state_size), jnp.float32)
    out_big = actor_forward(big_state, prep_f32, tile_b=16)
    jax.block_until_ready(out_big)
    ref_big = actor_forward_ref(big_state, params)
    assert out_big.shape == (50, action_size)
    assert jnp.allclose(out_big, ref_big, atol=1e-5, rtol=1e-5)

    print("KERNEL_OK")
</pallas_src>

<mosaic_0001>
module attributes {stable_mosaic.version = 11 : i64} {
  func.func @actor_kernel(%arg0: i32, %arg1: memref<8x8xf32, #tpu.memory_space<vmem>>, %arg2: memref<8x128xf32, #tpu.memory_space<vmem>>, %arg3: memref<1x128xf32, #tpu.memory_space<vmem>>, %arg4: memref<128x128xf32, #tpu.memory_space<vmem>>, %arg5: memref<1x128xf32, #tpu.memory_space<vmem>>, %arg6: memref<128x128xf32, #tpu.memory_space<vmem>>, %arg7: memref<1x4xf32, #tpu.memory_space<vmem>>, %arg8: memref<8x4xf32, #tpu.memory_space<vmem>>) attributes {dimension_semantics = [#tpu.dimension_semantics<parallel>], iteration_bounds = array<i64: 1>, scalar_prefetch = 0 : i64, scratch_operands = 0 : i64, tpu.core_type = #tpu.core_type<tc>, window_params = [{transform_indices = @transform_0, window_bounds = array<i64: 8, 8>}, {pipeline_mode = #tpu.pipeline_mode<synchronous>, transform_indices = @transform_1, window_bounds = array<i64: 8, 128>}, {pipeline_mode = #tpu.pipeline_mode<synchronous>, transform_indices = @transform_2, window_bounds = array<i64: 1, 128>}, {pipeline_mode = #tpu.pipeline_mode<synchronous>, transform_indices = @transform_3, window_bounds = array<i64: 128, 128>}, {pipeline_mode = #tpu.pipeline_mode<synchronous>, transform_indices = @transform_4, window_bounds = array<i64: 1, 128>}, {pipeline_mode = #tpu.pipeline_mode<synchronous>, transform_indices = @transform_5, window_bounds = array<i64: 128, 128>}, {pipeline_mode = #tpu.pipeline_mode<synchronous>, transform_indices = @transform_6, window_bounds = array<i64: 1, 4>}, {transform_indices = @transform_7, window_bounds = array<i64: 8, 4>}]} {
    %c0 = arith.constant 0 : index
    %c0_0 = arith.constant 0 : index
    %0 = vector.load %arg1[%c0, %c0_0] : memref<8x8xf32, #tpu.memory_space<vmem>>, vector<8x8xf32>
    %c0_1 = arith.constant 0 : index
    %c0_2 = arith.constant 0 : index
    %1 = vector.load %arg2[%c0_1, %c0_2] : memref<8x128xf32, #tpu.memory_space<vmem>>, vector<8x128xf32>
    %cst = arith.constant dense<0.000000e+00> : vector<8x128xf32>
    %2 = tpu.matmul %0, %1, %cst {dimension_numbers = #tpu.dot_dimension_numbers<[1], [0], [0], [1], [0, 0, 1, 1], [], []>} : vector<8x8xf32>, vector<8x128xf32>, vector<8x128xf32> -> vector<8x128xf32>
    %c0_3 = arith.constant 0 : index
    %c0_4 = arith.constant 0 : index
    %3 = vector.load %arg3[%c0_3, %c0_4] : memref<1x128xf32, #tpu.memory_space<vmem>>, vector<1x128xf32>
    %4 = vector.broadcast %3 : vector<1x128xf32> to vector<8x128xf32>
    %5 = arith.addf %2, %4 : vector<8x128xf32>
    %cst_5 = arith.constant 0.000000e+00 : f32
    %6 = vector.broadcast %cst_5 : f32 to vector<8x128xf32>
    %7 = arith.maximumf %5, %6 : vector<8x128xf32>
    %c0_6 = arith.constant 0 : index
    %c0_7 = arith.constant 0 : index
    %8 = vector.load %arg4[%c0_6, %c0_7] : memref<128x128xf32, #tpu.memory_space<vmem>>, vector<128x128xf32>
    %cst_8 = arith.constant dense<0.000000e+00> : vector<8x128xf32>
    %9 = tpu.matmul %7, %8, %cst_8 {dimension_numbers = #tpu.dot_dimension_numbers<[1], [0], [0], [1], [0, 0, 1, 1], [], []>} : vector<8x128xf32>, vector<128x128xf32>, vector<8x128xf32> -> vector<8x128xf32>
    %c0_9 = arith.constant 0 : index
    %c0_10 = arith.constant 0 : index
    %10 = vector.load %arg5[%c0_9, %c0_10] : memref<1x128xf32, #tpu.memory_space<vmem>>, vector<1x128xf32>
    %11 = vector.broadcast %10 : vector<1x128xf32> to vector<8x128xf32>
    %12 = arith.addf %9, %11 : vector<8x128xf32>
    %cst_11 = arith.constant 0.000000e+00 : f32
    %13 = vector.broadcast %cst_11 : f32 to vector<8x128xf32>
    %14 = arith.maximumf %12, %13 : vector<8x128xf32>
    %c0_12 = arith.constant 0 : index
    %c0_13 = arith.constant 0 : index
    %15 = vector.load %arg6[%c0_12, %c0_13] : memref<128x128xf32, #tpu.memory_space<vmem>>, vector<128x128xf32>
    %cst_14 = arith.constant dense<0.000000e+00> : vector<8x128xf32>
    %16 = tpu.matmul %14, %15, %cst_14 {dimension_numbers = #tpu.dot_dimension_numbers<[1], [0], [0], [1], [0, 0, 1, 1], [], []>} : vector<8x128xf32>, vector<128x128xf32>, vector<8x128xf32> -> vector<8x128xf32>
    %17 = vector.extract_strided_slice %16 {offsets = [0, 0], sizes = [8, 4], strides = [1, 1]} : vector<8x128xf32> to vector<8x4xf32>
    %c0_15 = arith.constant 0 : index
    %c0_16 = arith.constant 0 : index
    %18 = vector.load %arg7[%c0_15, %c0_16] : memref<1x4xf32, #tpu.memory_space<vmem>>, vector<1x4xf32>
    %19 = vector.broadcast %18 : vector<1x4xf32> to vector<8x4xf32>
    %20 = arith.addf %17, %19 : vector<8x4xf32>
    %21 = math.tanh %20 : vector<8x4xf32>
    %c0_17 = arith.constant 0 : index
    %c0_18 = arith.constant 0 : index
    %22 = vector.load %arg8[%c0_17, %c0_18] : memref<8x4xf32, #tpu.memory_space<vmem>>, vector<8x4xf32>
    tpu.vector_store %arg8[%c0_17, %c0_18], %21 {strides = array<i32>} : memref<8x4xf32, #tpu.memory_space<vmem>>, vector<8x4xf32>,
    return
  }
  func.func @transform_0(%arg0: i32) -> (i32, i32) {
    %c0_i32 = arith.constant 0 : i32
    %c0_i32_0 = arith.constant 0 : i32
    return %arg0, %c0_i32 : i32, i32
  }
  func.func @transform_1(%arg0: i32) -> (i32, i32) {
    %c0_i32 = arith.constant 0 : i32
    %c0_i32_0 = arith.constant 0 : i32
    %c0_i32_1 = arith.constant 0 : i32
    return %c0_i32, %c0_i32_0 : i32, i32
  }
  func.func @transform_2(%arg0: i32) -> (i32, i32) {
    %c0_i32 = arith.constant 0 : i32
    %c0_i32_0 = arith.constant 0 : i32
    %c0_i32_1 = arith.constant 0 : i32
    return %c0_i32, %c0_i32_0 : i32, i32
  }
  func.func @transform_3(%arg0: i32) -> (i32, i32) {
    %c0_i32 = arith.constant 0 : i32
    %c0_i32_0 = arith.constant 0 : i32
    %c0_i32_1 = arith.constant 0 : i32
    return %c0_i32, %c0_i32_0 : i32, i32
  }
  func.func @transform_4(%arg0: i32) -> (i32, i32) {
    %c0_i32 = arith.constant 0 : i32
    %c0_i32_0 = arith.constant 0 : i32
    %c0_i32_1 = arith.constant 0 : i32
    return %c0_i32, %c0_i32_0 : i32, i32
  }
  func.func @transform_5(%arg0: i32) -> (i32, i32) {
    %c0_i32 = arith.constant 0 : i32
    %c0_i32_0 = arith.constant 0 : i32
    %c0_i32_1 = arith.constant 0 : i32
    return %c0_i32, %c0_i32_0 : i32, i32
  }
  func.func @transform_6(%arg0: i32) -> (i32, i32) {
    %c0_i32 = arith.constant 0 : i32
    %c0_i32_0 = arith.constant 0 : i32
    %c0_i32_1 = arith.constant 0 : i32
    return %c0_i32, %c0_i32_0 : i32, i32
  }
  func.func @transform_7(%arg0: i32) -> (i32, i32) {
    %c0_i32 = arith.constant 0 : i32
    %c0_i32_0 = arith.constant 0 : i32
    return %arg0, %c0_i32 : i32, i32
  }
}

</mosaic_0001>

<llo_original>
// kernel: tpu_custom_call.1
$region0: #{tpu_custom_call.1}
  #allocation0 [shape = 'u32[]', space=smem, size = 0x4, offset = 0x4, fixed_abs, tag = 'smem constant byte address 0x4 - core index']
  #allocation1 [shape = 'u32[144,128]{1,0:T(1,128)}', space=vmem, size = 0x12000, scoped, tag = 'internal scratch']
  %s0 = inlined_call_operand.hbm [shape: f32[2,8], index: 0, kind: input, shape index: {}]
  %s1 = inlined_call_operand.hbm [shape: f32[8,128], index: 1, kind: input, shape index: {}]
  %s2 = inlined_call_operand.vmem [shape: f32[1,128], index: 2, kind: input, shape index: {}]
  %s3 = inlined_call_operand.hbm [shape: f32[128,128], index: 3, kind: input, shape index: {}]
  %s4 = inlined_call_operand.vmem [shape: f32[1,128], index: 4, kind: input, shape index: {}]
  %s5 = inlined_call_operand.hbm [shape: f32[128,128], index: 5, kind: input, shape index: {}]
  %s6 = inlined_call_operand.vmem [shape: f32[1,4], index: 6, kind: input, shape index: {}]
  %s7 = inlined_call_operand.hbm [shape: f32[2,4], index: 7, kind: output, shape index: {}]
  %s8 = sld [smem:[#allocation0]]
  $region54: #{tpu_custom_call.1} parent=0
    _
  %s10 = ssub.s32 1, %s8
  %s11 = scalar_select 0, %s10, %s8
  $region1: #{tpu_custom_call.1} parent=0
    #allocation2 [shape = 'u8[4096]{0}', space=vmem, size = 0x1000, scoped, tag = 'input window, operand 0, single buffered']
    #allocation3 [shape = 's32[1]{0}', space=sflag, size = 0x4, scoped, tag = 'scoped memory for tpu_custom_call.1']
    #allocation4 [shape = 's32[1]{0}', space=sflag, size = 0x4, scoped, tag = 'scoped memory for tpu_custom_call.1']
    #allocation5 [shape = 'u8[4096]{0}', space=vmem, size = 0x1000, scoped, tag = 'input window, operand 1, single buffered']
    #allocation6 [shape = 's32[1]{0}', space=sflag, size = 0x4, scoped, tag = 'scoped memory for tpu_custom_call.1']
    #allocation7 [shape = 'u8[65536]{0}', space=vmem, size = 0x10000, scoped, tag = 'input window, operand 3, single buffered']
    #allocation8 [shape = 'u8[65536]{0}', space=vmem, size = 0x10000, scoped, tag = 'input window, operand 5, single buffered']
    #allocation9 [shape = 's32[1]{0}', space=sflag, size = 0x4, scoped, tag = 'scoped memory for tpu_custom_call.1']
    #allocation10 [shape = 'u8[4096]{0}', space=vmem, size = 0x1000, scoped, tag = 'output window, operand 0, single buffered']
    %12 = vsyncpa [#allocation3], 0
    %13 = vsyncpa [#allocation6], 0
    %14 = vsyncpa [#allocation9], 0
    %15 = vsyncpa [#allocation4], 0
    // Predicated region
    $region2: #{tpu_custom_call.1} parent=1 // pred_check
      _
    $region3: #{tpu_custom_call.1} parent=1 // pred_check_branch
      %17 = sbr.rel (0) target = $region5
    $region4: #{tpu_custom_call.1} parent=1 // pred_region
      %s19 = ssub.s32 128, 32
      %20 = vsyncadd [#allocation3], %s19
      %s21 = sshll.u32 [#allocation2], 4
      %s22 = int_to_ptr.vmem [resolvable:$true] %s21
      %27 = dma.hbm_to_vmem [thread:$0]  %s0, 32, %s22, [#allocation3], 32, 32, 2
    $region5: #{tpu_custom_call.1} parent=1 // pred_fallthru
      _
    // Predicated region
    $region6: #{tpu_custom_call.1} parent=1 // pred_check
      _
    $region7: #{tpu_custom_call.1} parent=1 // pred_check_branch
      %29 = sbr.rel (0) target = $region9
    $region8: #{tpu_custom_call.1} parent=1 // pred_region
      %s31 = ssub.s32 128, 128
      %32 = vsyncadd [#allocation6], %s31
      %s34 = sshll.u32 [#allocation5], 4
      %s35 = int_to_ptr.vmem [resolvable:$true] %s34
      %37 = dma.hbm_to_vmem [thread:$0]  %s1, 128, %s35, [#allocation6]
    $region9: #{tpu_custom_call.1} parent=1 // pred_fallthru
      _
    // Predicated region
    $region10: #{tpu_custom_call.1} parent=1 // pred_check
      _
    $region11: #{tpu_custom_call.1} parent=1 // pred_check_branch
      %39 = sbr.rel (0) target = $region13
    $region12: #{tpu_custom_call.1} parent=1 // pred_region
      _
    $region13: #{tpu_custom_call.1} parent=1 // pred_fallthru
      _
    // Predicated region
    $region14: #{tpu_custom_call.1} parent=1 // pred_check
      _
    $region15: #{tpu_custom_call.1} parent=1 // pred_check_branch
      %41 = sbr.rel (0) target = $region17
    $region16: #{tpu_custom_call.1} parent=1 // pred_region
      %s43 = ssub.s32 2048, 2048
      %44 = vsyncadd [#allocation6], %s43
      %s45 = sshll.u32 [#allocation7], 4
      %s46 = int_to_ptr.vmem [resolvable:$true] %s45
      %51 = dma.hbm_to_vmem [thread:$0]  %s3, 2048, %s46, [#allocation6], 128, 128, 8
    $region17: #{tpu_custom_call.1} parent=1 // pred_fallthru
      _
    // Predicated region
    $region18: #{tpu_custom_call.1} parent=1 // pred_check
      _
    $region19: #{tpu_custom_call.1} parent=1 // pred_check_branch
      %53 = sbr.rel (0) target = $region21
    $region20: #{tpu_custom_call.1} parent=1 // pred_region
      _
    $region21: #{tpu_custom_call.1} parent=1 // pred_fallthru
      _
    // Predicated region
    $region22: #{tpu_custom_call.1} parent=1 // pred_check
      _
    $region23: #{tpu_custom_call.1} parent=1 // pred_check_branch
      %55 = sbr.rel (0) target = $region25
    $region24: #{tpu_custom_call.1} parent=1 // pred_region
      %s57 = ssub.s32 2048, 2048
      %58 = vsyncadd [#allocation9], %s57
      %s59 = sshll.u32 [#allocation8], 4
      %s60 = int_to_ptr.vmem [resolvable:$true] %s59
      %65 = dma.hbm_to_vmem [thread:$0]  %s5, 2048, %s60, [#allocation9], 128, 128, 8
    $region25: #{tpu_custom_call.1} parent=1 // pred_fallthru
      _
    // Predicated region
    $region26: #{tpu_custom_call.1} parent=1 // pred_check
      _
    $region27: #{tpu_custom_call.1} parent=1 // pred_check_branch
      %67 = sbr.rel (0) target = $region29
    $region28: #{tpu_custom_call.1} parent=1 // pred_region
      _
    $region29: #{tpu_custom_call.1} parent=1 // pred_fallthru
      _
    // Predicated region
    $region30: #{tpu_custom_call.1} parent=1 // pred_check
      _
    $region31: #{tpu_custom_call.1} parent=1 // pred_check_branch
      %69 = sbr.rel (0) target = $region33
    $region32: #{tpu_custom_call.1} parent=1 // pred_region
      %70 = dma.done [#allocation3], 128
    $region33: #{tpu_custom_call.1} parent=1 // pred_fallthru
      _
    // Predicated region
    $region34: #{tpu_custom_call.1} parent=1 // pred_check
      _
    $region35: #{tpu_custom_call.1} parent=1 // pred_check_branch
      %72 = sbr.rel (0) target = $region37
    $region36: #{tpu_custom_call.1} parent=1 // pred_region
      %73 = dma.done [#allocation6], 128
    $region37: #{tpu_custom_call.1} parent=1 // pred_fallthru
      _
    // Predicated region
    $region38: #{tpu_custom_call.1} parent=1 // pred_check
      _
    $region39: #{tpu_custom_call.1} parent=1 // pred_check_branch
      %75 = sbr.rel (0) target = $region41
    $region40: #{tpu_custom_call.1} parent=1 // pred_region
      %76 = dma.done [#allocation6], 2048
    $region41: #{tpu_custom_call.1} parent=1 // pred_fallthru
      _
    // Predicated region
    $region42: #{tpu_custom_call.1} parent=1 // pred_check
      _
    $region43: #{tpu_custom_call.1} parent=1 // pred_check_branch
      %78 = sbr.rel (0) target = $region45
    $region44: #{tpu_custom_call.1} parent=1 // pred_region
      %79 = dma.done [#allocation9], 2048
    $region45: #{tpu_custom_call.1} parent=1 // pred_fallthru
      _
    %v80 = vld [vmem:[#allocation2] sm:$0xff]
    %v81 = vld [vmem:[#allocation5] sm:$0xff]
    %v82 = vld [vmem:[%s2] sm:$0x1]
    %v84 = vlaneseq
    %v85 = vshrl.u32 %v84, 7
    %v86 = vsub.s32 0, %v85
    %v87 = vrot.slane %v82, %v86
    %vm89 = vcmask 64512
    %v91 = vsel %vm89, %v80, 0
    %93 = vmatprep.subr.mxu0 0.0
    %94 = vmatpush1.msra.mxu0 %v81
    %95 = vmatprep.subr.mxu0 0.0
    %96 = vmatpush1.msra.mxu0 0.0
    %97 = vmatprep.subr.mxu0 0.0
    %98 = vmatpush1.msra.mxu0 0.0
    %99 = vmatprep.subr.mxu0 0.0
    %100 = vmatpush1.msra.mxu0 0.0
    %101 = vmatprep.subr.mxu0 0.0
    %102 = vmatpush1.msra.mxu0 0.0
    %103 = vmatprep.subr.mxu0 0.0
    %104 = vmatpush1.msra.mxu0 0.0
    %105 = vmatprep.subr.mxu0 0.0
    %106 = vmatpush1.msra.mxu0 0.0
    %107 = vmatprep.subr.mxu0 0.0
    %108 = vmatpush1.msra.mxu0 0.0
    %109 = vmatprep.subr.mxu0 0.0
    %110 = vmatpush1.msra.mxu0 0.0
    %111 = vmatprep.subr.mxu0 0.0
    %112 = vmatpush1.msra.mxu0 0.0
    %113 = vmatprep.subr.mxu0 0.0
    %114 = vmatpush1.msra.mxu0 0.0
    %115 = vmatprep.subr.mxu0 0.0
    %116 = vmatpush1.msra.mxu0 0.0
    %117 = vmatprep.subr.mxu0 0.0
    %118 = vmatpush1.msra.mxu0 0.0
    %119 = vmatprep.subr.mxu0 0.0
    %120 = vmatpush1.msra.mxu0 0.0
    %121 = vmatprep.subr.mxu0 0.0
    %122 = vmatpush1.msra.mxu0 0.0
    %123 = vmatprep.subr.mxu0 0.0
    %124 = vmatpush1.msra.mxu0 0.0
    %125 = vmatprep.subr.mxu0 0.0
    %126 = vmatpush1.msra.mxu0 0.0
    %127 = vmatprep.subr.mxu0 0.0
    %128 = vmatpush1.msra.mxu0 0.0
    %129 = vmatprep.subr.mxu0 0.0
    %130 = vmatpush1.msra.mxu0 0.0
    %131 = vmatprep.subr.mxu0 0.0
    %132 = vmatpush1.msra.mxu0 0.0
    %133 = vmatprep.subr.mxu0 0.0
    %134 = vmatpush1.msra.mxu0 0.0
    %135 = vmatprep.subr.mxu0 0.0
    %136 = vmatpush1.msra.mxu0 0.0
    %137 = vmatprep.subr.mxu0 0.0
    %138 = vmatpush1.msra.mxu0 0.0
    %139 = vmatprep.subr.mxu0 0.0
    %140 = vmatpush1.msra.mxu0 0.0
    %141 = vmatprep.subr.mxu0 0.0
    %142 = vmatpush1.msra.mxu0 0.0
    %143 = vmatprep.subr.mxu0 0.0
    %144 = vmatpush1.msra.mxu0 0.0
    %145 = vmatprep.subr.mxu0 0.0
    %146 = vmatpush1.msra.mxu0 0.0
    %147 = vmatprep.subr.mxu0 0.0
    %148 = vmatpush1.msra.mxu0 0.0
    %149 = vmatprep.subr.mxu0 0.0
    %150 = vmatpush1.msra.mxu0 0.0
    %151 = vmatprep.subr.mxu0 0.0
    %152 = vmatpush1.msra.mxu0 0.0
    %153 = vmatprep.subr.mxu0 0.0
    %154 = vmatpush1.msra.mxu0 0.0
    %155 = vmatprep.subr.mxu0 0.0
    %156 = vmatpush1.msra.mxu0 0.0
    %157 = vmatprep.mubr.f32.mxu0 0.0
    %158 = vmatmul.mubr.f32.gmra.mrb[0].mxu0 %v91
    %v159 = vpop.f32.mrb[0].mxu0
    %v160 = vadd.f32 %v87, %v159
    %v161 = vpop.f32.mrb[0].mxu0
    %162 = vdwg.mxu0
    %v163 = vmax.f32 %v160, 0.0
    %v164 = vld [vmem:[#allocation7] sm:$0xff]
    %v165 = vld [vmem:[#allocation7 + $0x8] sm:$0xff]
    %v166 = vld [vmem:[#allocation7 + $0x10] sm:$0xff]
    %v167 = vld [vmem:[#allocation7 + $0x18] sm:$0xff]
    %v168 = vld [vmem:[#allocation7 + $0x20] sm:$0xff]
    %v169 = vld [vmem:[#allocation7 + $0x28] sm:$0xff]
    %v170 = vld [vmem:[#allocation7 + $0x30] sm:$0xff]
    %v171 = vld [vmem:[#allocation7 + $0x38] sm:$0xff]
    %v172 = vld [vmem:[#allocation7 + $0x40] sm:$0xff]
    %v173 = vld [vmem:[#allocation7 + $0x48] sm:$0xff]
    %v174 = vld [vmem:[#allocation7 + $0x50] sm:$0xff]
    %v175 = vld [vmem:[#allocation7 + $0x58] sm:$0xff]
    %v176 = vld [vmem:[#allocation7 + $0x60] sm:$0xff]
    %v177 = vld [vmem:[#allocation7 + $0x68] sm:$0xff]
    %v178 = vld [vmem:[#allocation7 + $0x70] sm:$0xff]
    %v179 = vld [vmem:[#allocation7 + $0x78] sm:$0xff]
    %v180 = vld [vmem:[%s4] sm:$0x1]
    %v182 = vlaneseq
    %v183 = vshrl.u32 %v182, 7
    %v184 = vsub.s32 0, %v183
    %v185 = vrot.slane %v180, %v184
    %187 = vmatprep.subr.mxu0 0.0
    %188 = vmatpush1.msra.mxu0 %v164
    %189 = vmatprep.subr.mxu0 0.0
    %190 = vmatpush1.msra.mxu0 %v165
    %191 = vmatprep.subr.mxu0 0.0
    %192 = vmatpush1.msra.mxu0 %v166
    %193 = vmatprep.subr.mxu0 0.0
    %194 = vmatpush1.msra.mxu0 %v167
    %195 = vmatprep.subr.mxu0 0.0
    %196 = vmatpush1.msra.mxu0 %v168
    %197 = vmatprep.subr.mxu0 0.0
    %198 = vmatpush1.msra.mxu0 %v169
    %199 = vmatprep.subr.mxu0 0.0
    %200 = vmatpush1.msra.mxu0 %v170
    %201 = vmatprep.subr.mxu0 0.0
    %202 = vmatpush1.msra.mxu0 %v171
    %203 = vmatprep.subr.mxu0 0.0
    %204 = vmatpush1.msra.mxu0 %v172
    %205 = vmatprep.subr.mxu0 0.0
    %206 = vmatpush1.msra.mxu0 %v173
    %207 = vmatprep.subr.mxu0 0.0
    %208 = vmatpush1.msra.mxu0 %v174
    %209 = vmatprep.subr.mxu0 0.0
    %210 = vmatpush1.msra.mxu0 %v175
    %211 = vmatprep.subr.mxu0 0.0
    %212 = vmatpush1.msra.mxu0 %v176
    %213 = vmatprep.subr.mxu0 0.0
    %214 = vmatpush1.msra.mxu0 %v177
    %215 = vmatprep.subr.mxu0 0.0
    %216 = vmatpush1.msra.mxu0 %v178
    %217 = vmatprep.subr.mxu0 0.0
    %218 = vmatpush1.msra.mxu0 %v179
    %219 = vmatprep.subr.mxu0 0.0
    %220 = vmatpush1.msra.mxu0 0.0
    %221 = vmatprep.subr.mxu0 0.0
    %222 = vmatpush1.msra.mxu0 0.0
    %223 = vmatprep.subr.mxu0 0.0
    %224 = vmatpush1.msra.mxu0 0.0
    %225 = vmatprep.subr.mxu0 0.0
    %226 = vmatpush1.msra.mxu0 0.0
    %227 = vmatprep.subr.mxu0 0.0
    %228 = vmatpush1.msra.mxu0 0.0
    %229 = vmatprep.subr.mxu0 0.0
    %230 = vmatpush1.msra.mxu0 0.0
    %231 = vmatprep.subr.mxu0 0.0
    %232 = vmatpush1.msra.mxu0 0.0
    %233 = vmatprep.subr.mxu0 0.0
    %234 = vmatpush1.msra.mxu0 0.0
    %235 = vmatprep.subr.mxu0 0.0
    %236 = vmatpush1.msra.mxu0 0.0
    %237 = vmatprep.subr.mxu0 0.0
    %238 = vmatpush1.msra.mxu0 0.0
    %239 = vmatprep.subr.mxu0 0.0
    %240 = vmatpush1.msra.mxu0 0.0
    %241 = vmatprep.subr.mxu0 0.0
    %242 = vmatpush1.msra.mxu0 0.0
    %243 = vmatprep.subr.mxu0 0.0
    %244 = vmatpush1.msra.mxu0 0.0
    %245 = vmatprep.subr.mxu0 0.0
    %246 = vmatpush1.msra.mxu0 0.0
    %247 = vmatprep.subr.mxu0 0.0
    %248 = vmatpush1.msra.mxu0 0.0
    %249 = vmatprep.subr.mxu0 0.0
    %250 = vmatpush1.msra.mxu0 0.0
    %251 = vmatprep.mubr.f32.mxu0 0.0
    %252 = vmatmul.mubr.f32.gmra.mrb[0].mxu0 %v163
    %v253 = vpop.f32.mrb[0].mxu0
    %v254 = vadd.f32 %v185, %v253
    %v255 = vpop.f32.mrb[0].mxu0
    %256 = vdwg.mxu0
    %v257 = vmax.f32 %v254, 0.0
    %v258 = vld [vmem:[#allocation8] sm:$0xff]
    %v259 = vld [vmem:[#allocation8 + $0x8] sm:$0xff]
    %v260 = vld [vmem:[#allocation8 + $0x10] sm:$0xff]
    %v261 = vld [vmem:[#allocation8 + $0x18] sm:$0xff]
    %v262 = vld [vmem:[#allocation8 + $0x20] sm:$0xff]
    %v263 = vld [vmem:[#allocation8 + $0x28] sm:$0xff]
    %v264 = vld [vmem:[#allocation8 + $0x30] sm:$0xff]
    %v265 = vld [vmem:[#allocation8 + $0x38] sm:$0xff]
    %v266 = vld [vmem:[#allocation8 + $0x40] sm:$0xff]
    %v267 = vld [vmem:[#allocation8 + $0x48] sm:$0xff]
    %v268 = vld [vmem:[#allocation8 + $0x50] sm:$0xff]
    %v269 = vld [vmem:[#allocation8 + $0x58] sm:$0xff]
    %v270 = vld [vmem:[#allocation8 + $0x60] sm:$0xff]
    %v271 = vld [vmem:[#allocation8 + $0x68] sm:$0xff]
    %v272 = vld [vmem:[#allocation8 + $0x70] sm:$0xff]
    %v273 = vld [vmem:[#allocation8 + $0x78] sm:$0xff]
    %274 = vmatprep.subr.mxu0 0.0
    %275 = vmatpush1.msra.mxu0 %v258
    %276 = vmatprep.subr.mxu0 0.0
    %277 = vmatpush1.msra.mxu0 %v259
    %278 = vmatprep.subr.mxu0 0.0
    %279 = vmatpush1.msra.mxu0 %v260
    %280 = vmatprep.subr.mxu0 0.0
    %281 = vmatpush1.msra.mxu0 %v261
    %282 = vmatprep.subr.mxu0 0.0
    %283 = vmatpush1.msra.mxu0 %v262
    %284 = vmatprep.subr.mxu0 0.0
    %285 = vmatpush1.msra.mxu0 %v263
    %286 = vmatprep.subr.mxu0 0.0
    %287 = vmatpush1.msra.mxu0 %v264
    %288 = vmatprep.subr.mxu0 0.0
    %289 = vmatpush1.msra.mxu0 %v265
    %290 = vmatprep.subr.mxu0 0.0
    %291 = vmatpush1.msra.mxu0 %v266
    %292 = vmatprep.subr.mxu0 0.0
    %293 = vmatpush1.msra.mxu0 %v267
    %294 = vmatprep.subr.mxu0 0.0
    %295 = vmatpush1.msra.mxu0 %v268
    %296 = vmatprep.subr.mxu0 0.0
    %297 = vmatpush1.msra.mxu0 %v269
    %298 = vmatprep.subr.mxu0 0.0
    %299 = vmatpush1.msra.mxu0 %v270
    %300 = vmatprep.subr.mxu0 0.0
    %301 = vmatpush1.msra.mxu0 %v271
    %302 = vmatprep.subr.mxu0 0.0
    %303 = vmatpush1.msra.mxu0 %v272
    %304 = vmatprep.subr.mxu0 0.0
    %305 = vmatpush1.msra.mxu0 %v273
    %306 = vmatprep.subr.mxu0 0.0
    %307 = vmatpush1.msra.mxu0 0.0
    %308 = vmatprep.subr.mxu0 0.0
    %309 = vmatpush1.msra.mxu0 0.0
    %310 = vmatprep.subr.mxu0 0.0
    %311 = vmatpush1.msra.mxu0 0.0
    %312 = vmatprep.subr.mxu0 0.0
    %313 = vmatpush1.msra.mxu0 0.0
    %314 = vmatprep.subr.mxu0 0.0
    %315 = vmatpush1.msra.mxu0 0.0
    %316 = vmatprep.subr.mxu0 0.0
    %317 = vmatpush1.msra.mxu0 0.0
    %318 = vmatprep.subr.mxu0 0.0
    %319 = vmatpush1.msra.mxu0 0.0
    %320 = vmatprep.subr.mxu0 0.0
    %321 = vmatpush1.msra.mxu0 0.0
    %322 = vmatprep.subr.mxu0 0.0
    %323 = vmatpush1.msra.mxu0 0.0
    %324 = vmatprep.subr.mxu0 0.0
    %325 = vmatpush1.msra.mxu0 0.0
    %326 = vmatprep.subr.mxu0 0.0
    %327 = vmatpush1.msra.mxu0 0.0
    %328 = vmatprep.subr.mxu0 0.0
    %329 = vmatpush1.msra.mxu0 0.0
    %330 = vmatprep.subr.mxu0 0.0
    %331 = vmatpush1.msra.mxu0 0.0
    %332 = vmatprep.subr.mxu0 0.0
    %333 = vmatpush1.msra.mxu0 0.0
    %334 = vmatprep.subr.mxu0 0.0
    %335 = vmatpush1.msra.mxu0 0.0
    %336 = vmatprep.subr.mxu0 0.0
    %337 = vmatpush1.msra.mxu0 0.0
    %338 = vmatprep.mubr.f32.mxu0 0.0
    %339 = vmatmul.mubr.f32.gmra.mrb[0].mxu0 %v257
    %v340 = vpop.f32.mrb[0].mxu0
    %v341 = vadd.f32 0.0, %v340
    %v342 = vpop.f32.mrb[0].mxu0
    %343 = vdwg.mxu0
    %v344 = vld [vmem:[%s6] sm:$0x1]
    %v346 = vlaneseq
    %v347 = vshrl.u32 %v346, 7
    %v348 = vsub.s32 0, %v347
    %v349 = vrot.slane %v344, %v348
    %v351 = vadd.f32 %v341, %v349
    %v352 = vtanh.pop %v351
    %vm353 = vcmask 31744
    %354 = vst.msk [vmem:[#allocation10] sm:$0xff] %vm353, %v352
    // Predicated region
    $region46: #{tpu_custom_call.1} parent=1 // pred_check
      _
    $region47: #{tpu_custom_call.1} parent=1 // pred_check_branch
      %356 = sbr.rel (0) target = $region49
    $region48: #{tpu_custom_call.1} parent=1 // pred_region
      %s358 = ssub.s32 128, 32
      %359 = vsyncadd [#allocation4], %s358
      %s360 = sshll.u32 [#allocation10], 4
      %s361 = int_to_ptr.vmem [resolvable:$true] %s360
      %366 = dma.vmem_to_hbm [thread:$0]  %s361, 32, %s7, [#allocation4], 32, 32, 2
    $region49: #{tpu_custom_call.1} parent=1 // pred_fallthru
      _
    // Predicated region
    $region50: #{tpu_custom_call.1} parent=1 // pred_check
      _
    $region51: #{tpu_custom_call.1} parent=1 // pred_check_branch
      %368 = sbr.rel (0) target = $region53
    $region52: #{tpu_custom_call.1} parent=1 // pred_region
      %369 = dma.done [#allocation4], 128
    $region53: #{tpu_custom_call.1} parent=1 // pred_fallthru
      _
    %370 = vsyncpa [#allocation3], 1
    %371 = vsyncpa [#allocation6], 1
    %372 = vsyncpa [#allocation9], 1
    %373 = vsyncpa [#allocation4], 1

</llo_original>
